<compile_context>
chip_gen: v7x
topology: tpu7x:2x2x1
jax: 0.10.0
libtpu: 0.0.40
codegen_flags: <defaults>
</compile_context>

<pallas_src>
import functools

import numpy as np
import jax
import jax.numpy as jnp
from jax import lax
from jax.experimental import pallas as pl
from jax.experimental.pallas import tpu as pltpu


def _voxelize_kernel(pts_ref, vox_ref, out_ref, *, low_bound, nx):
    NX, NY, NZ = nx
    NYZ = NY * NZ
    b = pl.program_id(1)                       # grid = (T, B); batch index

    P = pts_ref.shape[-1]
    px = pts_ref[0, 0, 0:1, :]                 # (1, P) world coords, lane-dense on P
    py = pts_ref[0, 0, 1:2, :]
    pz = pts_ref[0, 0, 2:3, :]

    vx = vox_ref[b, 0]                         # scalar voxel sizes from SMEM
    vy = vox_ref[b, 1]
    vz = vox_ref[b, 2]
    inv_x = 1.0 / vx                           # 3 scalar recips instead of 3*P divides
    inv_y = 1.0 / vy
    inv_z = 1.0 / vz

    # quantize: ijk = round((p - vox/2)/vox)   (round-half-to-even == torch.round)
    fi = jnp.round((px - vx * 0.5) * inv_x) - float(low_bound[0])   # (1, P) f32
    fj = jnp.round((py - vy * 0.5) * inv_y) - float(low_bound[1])
    fk = jnp.round((pz - vz * 0.5) * inv_z) - float(low_bound[2])

    valid = ((fi >= 0.0) & (fi < NX) & (fj >= 0.0) & (fj < NY)
             & (fk >= 0.0) & (fk < NZ))                              # (1, P)

    # clip in float BEFORE the int cast: 1e6 pad rows / tiny voxels cannot
    # overflow int32 and wrap back into the valid index range.
    i = jnp.clip(fi, 0.0, NX - 1).astype(jnp.int32)                  # (1, P)
    j = jnp.clip(fj, 0.0, NY - 1).astype(jnp.int32)
    k = jnp.clip(fk, 0.0, NZ - 1).astype(jnp.int32)
    yz = j * NZ + k                                                  # (1, P)

    # lane-dense one-hots (P on lanes), bf16 for MXU rate, exact 0/1 values
    xx = lax.broadcasted_iota(jnp.int32, (NX, P), 0)
    qq = lax.broadcasted_iota(jnp.int32, (NYZ, P), 0)
    oh_x = ((xx == i) & valid).astype(jnp.bfloat16)                  # (NX, P)
    oh_yz = (qq == yz).astype(jnp.bfloat16)                          # (NYZ, P)

    # counts[x, y*NZ+z] = sum_p oh_x[x,p] * oh_yz[yz,p]  -> single MXU matmul
    counts = lax.dot_general(oh_x, oh_yz, (((1,), (1,)), ((), ())),
                             preferred_element_type=jnp.float32)     # (NX, NYZ)

    # scatter_sum of ones over *unique* voxel ids == occupancy indicator
    out_ref[0, 0] = (counts > 0.0).astype(jnp.float32)


def voxelize_occupancy(points_tb3p, neck_voxel_sizes, low_bound, nx):
    """points_tb3p: (T, B, 3, P) f32 (pad 1e6, P % 128 == 0);
    neck_voxel_sizes: (B, 3) f32  ->  (T, B, NX, NY*NZ) f32 occupancy."""
    T, B, _, P = points_tb3p.shape
    NX, NY, NZ = nx
    NYZ = NY * NZ
    kernel = functools.partial(_voxelize_kernel,
                               low_bound=tuple(int(v) for v in low_bound),
                               nx=(NX, NY, NZ))
    return pl.pallas_call(
        kernel,
        out_shape=jax.ShapeDtypeStruct((T, B, NX, NYZ), jnp.float32),
        grid=(T, B),
        in_specs=[
            # one (map_type, batch) point slab, lane-dense on P
            pl.BlockSpec((1, 1, 3, P), lambda t, b: (t, b, 0, 0)),
            # voxel sizes: whole (B, 3) array resident in SMEM, scalar reads
            pl.BlockSpec(memory_space=pltpu.MemorySpace.SMEM),
        ],
        # lane-dense output: last dim NY*NZ (>=128 for NZ>=8); reshaped in glue
        out_specs=pl.BlockSpec((1, 1, NX, NYZ), lambda t, b: (t, b, 0, 0)),
        compiler_params=pltpu.CompilerParams(
            dimension_semantics=("parallel", "parallel")),
    )(points_tb3p, neck_voxel_sizes)


class MapEncoderPallas:
    def __init__(self, cube_bbox_size, return_dense_cube=True, use_embedding=False,
                 map_types=(), embedding_dim=1, key=None):
        self.cube_bbox_size = cube_bbox_size
        self.return_dense_cube = return_dense_cube
        self.use_embedding = use_embedding
        if isinstance(cube_bbox_size, int):
            nb = cube_bbox_size // 2
            low_bound = [-nb] * 3
            high_bound = [nb] * 3
        else:
            low_bound = [-int(r / 2) for r in cube_bbox_size]
            high_bound = [int(r / 2) for r in cube_bbox_size]
        self.low_bound = low_bound
        self.high_bound = high_bound
        self.nx = tuple(h - l for h, l in zip(high_bound, low_bound))
        if use_embedding:
            if key is None:
                key = jax.random.PRNGKey(0)
            # deterministic N(0,1) init, mirrors nn.Embedding(...).weight.data.normal_(0, 1)
            self.embedding = jax.random.normal(key, (len(map_types), embedding_dim),
                                               jnp.float32)

    def __call__(self, map_3d_dict, neck_voxel_sizes):
        map_types = list(map_3d_dict.keys())
        T = len(map_types)
        B = len(map_3d_dict[map_types[0]])
        NX, NY, NZ = self.nx

        # Stack ALL map types into one (T, B, 3, P) array (points transposed so P
        # is the lane axis); pad P to a multiple of 128 with 1e6 (filtered in-kernel).
        max_len = 1
        for mt in map_types:
            for p in map_3d_dict[mt]:
                max_len = max(max_len, int(p.shape[0]))
        P = max(128, ((max_len + 127) // 128) * 128)
        padded = np.full((T, B, 3, P), 1_000_000.0, np.float32)
        for t, mt in enumerate(map_types):
            for b, p in enumerate(map_3d_dict[mt]):
                n = int(p.shape[0])
                if n:
                    padded[t, b, :, :n] = np.asarray(p, np.float32).T

        occ = voxelize_occupancy(jnp.asarray(padded),
                                 jnp.asarray(neck_voxel_sizes, jnp.float32),
                                 self.low_bound, self.nx)            # (T, B, NX, NY*NZ)
        occ = occ.reshape(T, B, NX, NY, NZ)                          # (T, B, X, Y, Z)

        if self.use_embedding:
            # (T,B,X,Y,Z,1) * (T,1,1,1,1,E) -> (T,B,X,Y,Z,E)
            final = occ[..., None] * self.embedding[:, None, None, None, None, :]
        else:
            final = occ[..., None]
        # concat over map types along the channel axis, in dict order
        map_flag = jnp.moveaxis(final, 0, 4).reshape(
            B, NX, NY, NZ, T * final.shape[-1])
        # TODO(synk): fvdb.nn.vdbtensor_from_dense(map_flag, ijk_min=[-X//2,-Y//2,-Z//2])
        # (sparse VDB tensor construction) has no Pallas/JAX equivalent; the dense
        # (B, X, Y, Z, C) grid is returned instead.
        return map_flag


def reference_numpy(map_3d_dict, neck_voxel_sizes, low_bound, high_bound, embedding=None):
    nx = [h - l for h, l in zip(high_bound, low_bound)]
    vox = np.asarray(neck_voxel_sizes, np.float32)
    outs = []
    for t_idx, (_, pts_list) in enumerate(map_3d_dict.items()):
        B = len(pts_list)
        occ = np.zeros((B, nx[0], nx[1], nx[2], 1), np.float32)
        for b, p in enumerate(pts_list):
            p = np.asarray(p, np.float32)
            if p.shape[0] == 0:
                continue
            ijk = np.round((p - vox[b] * 0.5) / vox[b]).astype(np.int64)
            ijk = ijk - np.asarray(low_bound, np.int64)
            keep = ((ijk[:, 0] >= 0) & (ijk[:, 0] < nx[0]) &
                    (ijk[:, 1] >= 0) & (ijk[:, 1] < nx[1]) &
                    (ijk[:, 2] >= 0) & (ijk[:, 2] < nx[2]))
            ijk = ijk[keep]
            occ[b, ijk[:, 0], ijk[:, 1], ijk[:, 2], 0] = 1.0
        if embedding is not None:
            occ = occ * np.asarray(embedding[t_idx])
        outs.append(occ)
    return np.concatenate(outs, axis=-1)


if __name__ == "__main__":
    key = jax.random.PRNGKey(0)
    k_lane0, k_lane1, k_cw0, k_emb = jax.random.split(key, 4)

    B = 2
    cube_bbox_size = 16     # -> 16x16x16 occupancy cube, low_bound = [-8, -8, -8]
    # voxel size 0.5 -> the cube covers roughly [-4, 4] in world coordinates
    lane = [jax.random.uniform(k_lane0, (37, 3), jnp.float32, -4.0, 4.0),
            jax.random.uniform(k_lane1, (53, 3), jnp.float32, -4.0, 4.0)]
    crosswalk = [jax.random.uniform(k_cw0, (24, 3), jnp.float32, -4.0, 4.0),
                 jnp.zeros((0, 3), jnp.float32)]          # empty point-set case
    map_3d_dict = {"lane": lane, "crosswalk": crosswalk}
    neck_voxel_sizes = jnp.full((B, 3), 0.5, jnp.float32)

    enc = MapEncoderPallas(cube_bbox_size, return_dense_cube=True, use_embedding=True,
                           map_types=["lane", "crosswalk"], embedding_dim=2, key=k_emb)

    out = enc(map_3d_dict, neck_voxel_sizes)
    out = jax.block_until_ready(out)

    ref = reference_numpy(map_3d_dict, neck_voxel_sizes, enc.low_bound, enc.high_bound,
                          embedding=np.asarray(enc.embedding))
    assert out.shape == (B, 16, 16, 16, 4), out.shape
    assert np.allclose(np.asarray(out), ref, atol=1e-5), "mismatch vs numpy reference"
    print("KERNEL_OK")
</pallas_src>

<mosaic_0001>
module attributes {stable_mosaic.version = 11 : i64} {
  func.func @_voxelize_kernel(%arg0: i32, %arg1: i32, %arg2: memref<1x1x3x128xf32, #tpu.memory_space<vmem>>, %arg3: memref<2x3xf32, #tpu.memory_space<smem>>, %arg4: memref<1x1x16x256xf32, #tpu.memory_space<vmem>>) attributes {dimension_semantics = [#tpu.dimension_semantics<parallel>, #tpu.dimension_semantics<parallel>], iteration_bounds = array<i64: 2, 2>, scalar_prefetch = 0 : i64, scratch_operands = 0 : i64, tpu.core_type = #tpu.core_type<tc>, window_params = [{transform_indices = @transform_0, window_bounds = array<i64: 1, 1, 3, 128>}, {transform_indices = @transform_1, window_bounds = array<i64: 2, 3>}, {transform_indices = @transform_2, window_bounds = array<i64: 1, 1, 16, 256>}]} {
    %c0 = arith.constant 0 : index
    %c0_0 = arith.constant 0 : index
    %c0_1 = arith.constant 0 : index
    %c0_2 = arith.constant 0 : index
    %0 = vector.load %arg2[%c0, %c0_0, %c0_1, %c0_2] : memref<1x1x3x128xf32, #tpu.memory_space<vmem>>, vector<1x1x1x128xf32>
    %1 = vector.shape_cast %0 : vector<1x1x1x128xf32> to vector<1x128xf32>
    %c0_3 = arith.constant 0 : index
    %c0_4 = arith.constant 0 : index
    %c1 = arith.constant 1 : index
    %c0_5 = arith.constant 0 : index
    %2 = vector.load %arg2[%c0_3, %c0_4, %c1, %c0_5] : memref<1x1x3x128xf32, #tpu.memory_space<vmem>>, vector<1x1x1x128xf32>
    %3 = vector.shape_cast %2 : vector<1x1x1x128xf32> to vector<1x128xf32>
    %c0_6 = arith.constant 0 : index
    %c0_7 = arith.constant 0 : index
    %c2 = arith.constant 2 : index
    %c0_8 = arith.constant 0 : index
    %4 = vector.load %arg2[%c0_6, %c0_7, %c2, %c0_8] : memref<1x1x3x128xf32, #tpu.memory_space<vmem>>, vector<1x1x1x128xf32>
    %5 = vector.shape_cast %4 : vector<1x1x1x128xf32> to vector<1x128xf32>
    %6 = arith.index_cast %arg1 : i32 to index
    %c0_9 = arith.constant 0 : index
    %7 = memref.load %arg3[%6, %c0_9] : memref<2x3xf32, #tpu.memory_space<smem>>
    %8 = arith.index_cast %arg1 : i32 to index
    %c1_10 = arith.constant 1 : index
    %9 = memref.load %arg3[%8, %c1_10] : memref<2x3xf32, #tpu.memory_space<smem>>
    %10 = arith.index_cast %arg1 : i32 to index
    %c2_11 = arith.constant 2 : index
    %11 = memref.load %arg3[%10, %c2_11] : memref<2x3xf32, #tpu.memory_space<smem>>
    %cst = arith.constant 1.000000e+00 : f32
    %12 = arith.divf %cst, %7 : f32
    %cst_12 = arith.constant 1.000000e+00 : f32
    %13 = arith.divf %cst_12, %9 : f32
    %cst_13 = arith.constant 1.000000e+00 : f32
    %14 = arith.divf %cst_13, %11 : f32
    %cst_14 = arith.constant 5.000000e-01 : f32
    %15 = arith.mulf %7, %cst_14 : f32
    %16 = vector.broadcast %15 : f32 to vector<1x128xf32>
    %17 = arith.subf %1, %16 : vector<1x128xf32>
    %18 = vector.broadcast %12 : f32 to vector<1x128xf32>
    %19 = arith.mulf %17, %18 : vector<1x128xf32>
    %20 = math.roundeven %19 : vector<1x128xf32>
    %cst_15 = arith.constant -8.000000e+00 : f32
    %21 = vector.broadcast %cst_15 : f32 to vector<1x128xf32>
    %22 = arith.subf %20, %21 : vector<1x128xf32>
    %cst_16 = arith.constant 5.000000e-01 : f32
    %23 = arith.mulf %9, %cst_16 : f32
    %24 = vector.broadcast %23 : f32 to vector<1x128xf32>
    %25 = arith.subf %3, %24 : vector<1x128xf32>
    %26 = vector.broadcast %13 : f32 to vector<1x128xf32>
    %27 = arith.mulf %25, %26 : vector<1x128xf32>
    %28 = math.roundeven %27 : vector<1x128xf32>
    %cst_17 = arith.constant -8.000000e+00 : f32
    %29 = vector.broadcast %cst_17 : f32 to vector<1x128xf32>
    %30 = arith.subf %28, %29 : vector<1x128xf32>
    %cst_18 = arith.constant 5.000000e-01 : f32
    %31 = arith.mulf %11, %cst_18 : f32
    %32 = vector.broadcast %31 : f32 to vector<1x128xf32>
    %33 = arith.subf %5, %32 : vector<1x128xf32>
    %34 = vector.broadcast %14 : f32 to vector<1x128xf32>
    %35 = arith.mulf %33, %34 : vector<1x128xf32>
    %36 = math.roundeven %35 : vector<1x128xf32>
    %cst_19 = arith.constant -8.000000e+00 : f32
    %37 = vector.broadcast %cst_19 : f32 to vector<1x128xf32>
    %38 = arith.subf %36, %37 : vector<1x128xf32>
    %cst_20 = arith.constant 0.000000e+00 : f32
    %39 = vector.broadcast %cst_20 : f32 to vector<1x128xf32>
    %40 = arith.cmpf oge, %22, %39 : vector<1x128xf32>
    %cst_21 = arith.constant 1.600000e+01 : f32
    %41 = vector.broadcast %cst_21 : f32 to vector<1x128xf32>
    %42 = arith.cmpf olt, %22, %41 : vector<1x128xf32>
    %43 = arith.andi %40, %42 : vector<1x128xi1>
    %cst_22 = arith.constant 0.000000e+00 : f32
    %44 = vector.broadcast %cst_22 : f32 to vector<1x128xf32>
    %45 = arith.cmpf oge, %30, %44 : vector<1x128xf32>
    %46 = arith.andi %43, %45 : vector<1x128xi1>
    %cst_23 = arith.constant 1.600000e+01 : f32
    %47 = vector.broadcast %cst_23 : f32 to vector<1x128xf32>
    %48 = arith.cmpf olt, %30, %47 : vector<1x128xf32>
    %49 = arith.andi %46, %48 : vector<1x128xi1>
    %cst_24 = arith.constant 0.000000e+00 : f32
    %50 = vector.broadcast %cst_24 : f32 to vector<1x128xf32>
    %51 = arith.cmpf oge, %38, %50 : vector<1x128xf32>
    %52 = arith.andi %49, %51 : vector<1x128xi1>
    %cst_25 = arith.constant 1.600000e+01 : f32
    %53 = vector.broadcast %cst_25 : f32 to vector<1x128xf32>
    %54 = arith.cmpf olt, %38, %53 : vector<1x128xf32>
    %55 = arith.andi %52, %54 : vector<1x128xi1>
    %cst_26 = arith.constant 0.000000e+00 : f32
    %c15_i32 = arith.constant 15 : i32
    %56 = vector.broadcast %cst_26 : f32 to vector<1x128xf32>
    %57 = arith.maximumf %56, %22 : vector<1x128xf32>
    %58 = arith.sitofp %c15_i32 : i32 to f32
    %59 = vector.broadcast %58 : f32 to vector<1x128xf32>
    %60 = arith.minimumf %59, %57 : vector<1x128xf32>
    %61 = arith.fptosi %60 : vector<1x128xf32> to vector<1x128xi32>
    %cst_27 = arith.constant 0.000000e+00 : f32
    %c15_i32_28 = arith.constant 15 : i32
    %62 = vector.broadcast %cst_27 : f32 to vector<1x128xf32>
    %63 = arith.maximumf %62, %30 : vector<1x128xf32>
    %64 = arith.sitofp %c15_i32_28 : i32 to f32
    %65 = vector.broadcast %64 : f32 to vector<1x128xf32>
    %66 = arith.minimumf %65, %63 : vector<1x128xf32>
    %67 = arith.fptosi %66 : vector<1x128xf32> to vector<1x128xi32>
    %cst_29 = arith.constant 0.000000e+00 : f32
    %c15_i32_30 = arith.constant 15 : i32
    %68 = vector.broadcast %cst_29 : f32 to vector<1x128xf32>
    %69 = arith.maximumf %68, %38 : vector<1x128xf32>
    %70 = arith.sitofp %c15_i32_30 : i32 to f32
    %71 = vector.broadcast %70 : f32 to vector<1x128xf32>
    %72 = arith.minimumf %71, %69 : vector<1x128xf32>
    %73 = arith.fptosi %72 : vector<1x128xf32> to vector<1x128xi32>
    %c16_i32 = arith.constant 16 : i32
    %74 = vector.broadcast %c16_i32 : i32 to vector<1x128xi32>
    %75 = arith.muli %67, %74 : vector<1x128xi32>
    %76 = arith.addi %75, %73 : vector<1x128xi32>
    %77 = tpu.iota {dimensions = array<i32: 0>} : vector<16x128xi32>
    %78 = tpu.iota {dimensions = array<i32: 0>} : vector<256x128xi32>
    %79 = vector.broadcast %61 : vector<1x128xi32> to vector<16x128xi32>
    %80 = arith.cmpi eq, %77, %79 : vector<16x128xi32>
    %81 = vector.broadcast %55 : vector<1x128xi1> to vector<16x128xi1>
    %82 = arith.andi %80, %81 : vector<16x128xi1>
    %83 = arith.extui %82 : vector<16x128xi1> to vector<16x128xi32>
    %84 = arith.sitofp %83 : vector<16x128xi32> to vector<16x128xf32>
    %85 = arith.truncf %84 : vector<16x128xf32> to vector<16x128xbf16>
    %86 = vector.broadcast %76 : vector<1x128xi32> to vector<256x128xi32>
    %87 = arith.cmpi eq, %78, %86 : vector<256x128xi32>
    %88 = arith.extui %87 : vector<256x128xi1> to vector<256x128xi32>
    %89 = arith.sitofp %88 : vector<256x128xi32> to vector<256x128xf32>
    %90 = arith.truncf %89 : vector<256x128xf32> to vector<256x128xbf16>
    %cst_31 = arith.constant dense<0.000000e+00> : vector<16x256xf32>
    %91 = tpu.matmul %85, %90, %cst_31 {dimension_numbers = #tpu.dot_dimension_numbers<[1], [1], [0], [0], [0, 0, 1, 0], [], []>} : vector<16x128xbf16>, vector<256x128xbf16>, vector<16x256xf32> -> vector<16x256xf32>
    %cst_32 = arith.constant 0.000000e+00 : f32
    %92 = vector.broadcast %cst_32 : f32 to vector<16x256xf32>
    %93 = arith.cmpf ogt, %91, %92 : vector<16x256xf32>
    %94 = arith.extui %93 : vector<16x256xi1> to vector<16x256xi32>
    %95 = arith.sitofp %94 : vector<16x256xi32> to vector<16x256xf32>
    %c0_33 = arith.constant 0 : index
    %c0_34 = arith.constant 0 : index
    %c0_35 = arith.constant 0 : index
    %c0_36 = arith.constant 0 : index
    %96 = vector.load %arg4[%c0_33, %c0_34, %c0_35, %c0_36] : memref<1x1x16x256xf32, #tpu.memory_space<vmem>>, vector<1x1x16x256xf32>
    %97 = vector.shape_cast %96 : vector<1x1x16x256xf32> to vector<16x256xf32>
    %98 = vector.shape_cast %95 : vector<16x256xf32> to vector<1x1x16x256xf32>
    tpu.vector_store %arg4[%c0_33, %c0_34, %c0_35, %c0_36], %98 {strides = array<i32>} : memref<1x1x16x256xf32, #tpu.memory_space<vmem>>, vector<1x1x16x256xf32>,
    return
  }
  func.func @transform_0(%arg0: i32, %arg1: i32) -> (i32, i32, i32, i32) {
    %c0_i32 = arith.constant 0 : i32
    %c0_i32_0 = arith.constant 0 : i32
    %c0_i32_1 = arith.constant 0 : i32
    return %arg0, %arg1, %c0_i32, %c0_i32_0 : i32, i32, i32, i32
  }
  func.func @transform_1(%arg0: i32, %arg1: i32) -> (i32, i32) {
    %c0_i32 = arith.constant 0 : i32
    %c0_i32_0 = arith.constant 0 : i32
    %c0_i32_1 = arith.constant 0 : i32
    return %c0_i32, %c0_i32_0 : i32, i32
  }
  func.func @transform_2(%arg0: i32, %arg1: i32) -> (i32, i32, i32, i32) {
    %c0_i32 = arith.constant 0 : i32
    %c0_i32_0 = arith.constant 0 : i32
    %c0_i32_1 = arith.constant 0 : i32
    return %arg0, %arg1, %c0_i32, %c0_i32_0 : i32, i32, i32, i32
  }
}

</mosaic_0001>

<llo_original>
// kernel: tpu_custom_call.1
$region0: #{tpu_custom_call.1}
  #allocation0 [shape = 'u32[]', space=smem, size = 0x4, offset = 0x4, fixed_abs, tag = 'smem constant byte address 0x4 - core index']
  #allocation1 [shape = 'u32[144,128]{1,0:T(1,128)}', space=vmem, size = 0x12000, scoped, tag = 'internal scratch']
  %s0 = inlined_call_operand.vmem [shape: f32[2,2,3,128], index: 0, kind: input, shape index: {}]
  %s1 = inlined_call_operand.vmem [shape: f32[2,3], index: 1, kind: input, shape index: {}]
  %s2 = inlined_call_operand.hbm [shape: f32[2,2,16,256], index: 2, kind: output, shape index: {}]
  %s3 = sld [smem:[#allocation0]]
  $region45: #{tpu_custom_call.1} parent=0
    _
  %s5 = ssub.s32 1, %s3
  %s6 = scalar_select 0, %s5, %s3
  $region1: #{tpu_custom_call.1} parent=0
    #allocation2 [shape = 'u8[1024]{0}', space=smem, size = 0x400, scoped, tag = 'input window, operand 1, single buffered']
    #allocation3 [shape = 's32[2]{0}', space=sflag, size = 0x8, scoped, tag = 'scoped memory for tpu_custom_call.1']
    #allocation4 [shape = 's32[2]{0}', space=sflag, size = 0x8, scoped, tag = 'scoped memory for tpu_custom_call.1']
    #allocation5 [shape = 'u8[32768]{0}', space=vmem, size = 0x8000, scoped, tag = 'output window, operand 0']
    %7 = vsyncpa [#allocation4], 0
    %8 = vsyncpa [#allocation3], 0
    %s9 = scalar_lea.sflag [#allocation3], 1
    %10 = vsyncpa %s9, 0
    loop: start=0, step=1, limit=6
    $region2: #{tpu_custom_call.1} parent=1 // loop_pre_header
      _
    $region3: #{tpu_custom_call.1} parent=1 // loop_header
      %s12 = sphi 0, %s16
      %p13 = scmp.ge.s32.totalorder %s12, 6
      %s19 = sphi 0, %s31
      %s20 = sphi 0, %s27
      %s21 = sphi 0, %s19
      %s22 = sphi 0, %s20
      %s23 = sphi 0, %s21
      %s24 = sphi 0, %s22
      %s36 = sphi 0, %s38
      %s39 = sphi 0, %s36
      %s40 = sphi 0, %s39
      %s56 = sphi 0, %s40
      %s60 = sphi 0, %s60
      %s62 = sphi 0, %s60
      %s63 = sphi 0, %s62
      %s77 = sphi 0, %s63
      %s85 = sphi 0, %s87
      %s88 = sphi 0, %s85
      %s89 = sphi 0, %s88
      %s105 = sphi 0, %s89
    $region4: #{tpu_custom_call.1} parent=1 // loop_header_branch
      %15 = sbr.rel (%p13) target = $region8
    $region5: #{tpu_custom_call.1} parent=1 // loop_body
      %s17 = ssub.s32 %s12, 1
      %s18 = ssub.s32 %s12, 2
      %s25 = sadd.s32 1, %s20
      %p26 = scmp.ge.s32.totalorder %s25, 2
      %s27 = scalar_select %p26, 0, %s25
      %s28 = sadd.s32 1, %s19
      %s29 = scalar_select %p26, %s28, %s19
      %p30 = scmp.ge.s32.totalorder %s29, 2
      %s31 = scalar_select %p30, 0, %s29
      %s32 = ssub.s32 %s19, %s31
      %s33 = ssub.s32 %s20, %s27
      %s34 = sor.u32 %s32, %s33
      %p35 = scmp.eq.s32.totalorder %s34, 0
      %s37 = sadd.s32 %s36, 1
      %s38 = scalar_select %p35, %s36, %s37
      %p41 = pneg %p35
      %p42 = scmp.eq.s32.totalorder %s12, 3
      %p43 = por %p41, %p42
      %p44 = scmp.ne.s32.totalorder %s36, %s39
      %p45 = scmp.eq.s32.totalorder %s12, 0
      %p46 = por %p44, %p45
      %p47 = scmp.ne.s32.totalorder %s36, %s39
      %p48 = scmp.eq.s32.totalorder %s17, 3
      %p49 = por %p47, %p48
      %p50 = scmp.ne.s32.totalorder %s39, %s40
      %p51 = scmp.eq.s32.totalorder %s17, 0
      %p52 = por %p50, %p51
      %p53 = scmp.ne.s32.totalorder %s39, %s40
      %p54 = scmp.eq.s32.totalorder %s18, 3
      %p55 = por %p53, %p54
      %p57 = scmp.ne.s32.totalorder %s40, %s56
      %p58 = scmp.eq.s32.totalorder %s18, 0
      %p59 = por %p57, %p58
      %s61 = sadd.s32 %s60, 1
      %p64 = scmp.eq.s32.totalorder %s12, 3
      %p65 = scmp.ne.s32.totalorder %s60, %s62
      %p66 = scmp.eq.s32.totalorder %s12, 0
      %p67 = por %p65, %p66
      %p68 = scmp.ne.s32.totalorder %s60, %s62
      %p69 = scmp.eq.s32.totalorder %s17, 3
      %p70 = por %p68, %p69
      %p71 = scmp.ne.s32.totalorder %s62, %s63
      %p72 = scmp.eq.s32.totalorder %s17, 0
      %p73 = por %p71, %p72
      %p74 = scmp.ne.s32.totalorder %s62, %s63
      %p75 = scmp.eq.s32.totalorder %s18, 3
      %p76 = por %p74, %p75
      %p78 = scmp.ne.s32.totalorder %s63, %s77
      %p79 = scmp.eq.s32.totalorder %s18, 0
      %p80 = por %p78, %p79
      %s81 = ssub.s32 %s19, %s31
      %s82 = ssub.s32 %s20, %s27
      %s83 = sor.u32 %s81, %s82
      %p84 = scmp.eq.s32.totalorder %s83, 0
      %s86 = sadd.s32 %s85, 1
      %s87 = scalar_select %p84, %s85, %s86
      %p90 = pneg %p84
      %p91 = scmp.eq.s32.totalorder %s12, 3
      %p92 = por %p90, %p91
      %p93 = scmp.ne.s32.totalorder %s85, %s88
      %p94 = scmp.eq.s32.totalorder %s12, 0
      %p95 = por %p93, %p94
      %p96 = scmp.ne.s32.totalorder %s85, %s88
      %p97 = scmp.eq.s32.totalorder %s17, 3
      %p98 = por %p96, %p97
      %p99 = scmp.ne.s32.totalorder %s88, %s89
      %p100 = scmp.eq.s32.totalorder %s17, 0
      %p101 = por %p99, %p100
      %p102 = scmp.ne.s32.totalorder %s88, %s89
      %p103 = scmp.eq.s32.totalorder %s18, 3
      %p104 = por %p102, %p103
      %p106 = scmp.ne.s32.totalorder %s89, %s105
      %p107 = scmp.eq.s32.totalorder %s18, 0
      %p108 = por %p106, %p107
      %p109 = scmp.le.s32.totalorder 1, %s12
      %p110 = scmp.lt.s32.totalorder %s12, 5
      %p111 = pnand %p109, %p110
      %p112 = pneg %p111
      // Predicated region
      $region9: #{tpu_custom_call.1} parent=5 // pred_check
        _
      $region10: #{tpu_custom_call.1} parent=5 // pred_check_branch
        %114 = sbr.rel (%p111) target = $region12
      $region11: #{tpu_custom_call.1} parent=5 // pred_region
        %s115 = ssub.s32 %s12, 1
        // Predicated region
        $region13: #{tpu_custom_call.1} parent=11 // pred_check
          %p116 = pneg %p73
        $region14: #{tpu_custom_call.1} parent=11 // pred_check_branch
          %118 = sbr.rel (%p116) target = $region16
        $region15: #{tpu_custom_call.1} parent=11 // pred_region
          %s120 = ssub.s32 32, 32
          %121 = vsyncadd [#allocation4], %s120
          %s123 = sshll.u32 %s1, 4
          %s124 = int_to_ptr.vmem [resolvable:$true] %s123
          %126 = dma.vmem_to_smem %s124, 32, [#allocation2], [#allocation4]
        $region16: #{tpu_custom_call.1} parent=11 // pred_fallthru
          _
      $region12: #{tpu_custom_call.1} parent=5 // pred_fallthru
        _
      %p127 = scmp.lt.s32.totalorder %s12, 4
      // Predicated region
      $region17: #{tpu_custom_call.1} parent=5 // pred_check
        %p128 = pneg %p127
      $region18: #{tpu_custom_call.1} parent=5 // pred_check_branch
        %130 = sbr.rel (%p128) target = $region20
      $region19: #{tpu_custom_call.1} parent=5 // pred_region
        // Predicated region
        $region21: #{tpu_custom_call.1} parent=19 // pred_check
          %p131 = pneg %p46
        $region22: #{tpu_custom_call.1} parent=19 // pred_check_branch
          %133 = sbr.rel (%p131) target = $region24
        $region23: #{tpu_custom_call.1} parent=19 // pred_region
          %p134 = scmp.lt.s32.totalorder %s19, 1
          %s135 = scalar_select %p134, %s19, 1
          %p136 = scmp.lt.s32.totalorder %s20, 1
          %s137 = scalar_select %p136, %s20, 1
          %s138 = smul.addr %s135, 2
          %s139 = sadd.s32 %s137, %s138
          %s140 = smul.addr %s139, 4
          %s141 = scalar_lea.vmem %s0, %s140
        $region24: #{tpu_custom_call.1} parent=19 // pred_fallthru
          _
      $region20: #{tpu_custom_call.1} parent=5 // pred_fallthru
        _
      %p142 = scmp.le.s32.totalorder 1, %s12
      %p143 = scmp.lt.s32.totalorder %s12, 5
      %p144 = pnand %p142, %p143
      %p145 = pneg %p144
      // Predicated region
      $region25: #{tpu_custom_call.1} parent=5 // pred_check
        _
      $region26: #{tpu_custom_call.1} parent=5 // pred_check_branch
        %147 = sbr.rel (%p144) target = $region28
      $region27: #{tpu_custom_call.1} parent=5 // pred_region
        %s148 = ssub.s32 %s12, 1
        // Predicated region
        $region29: #{tpu_custom_call.1} parent=27 // pred_check
          %p149 = pneg %p73
        $region30: #{tpu_custom_call.1} parent=27 // pred_check_branch
          %151 = sbr.rel (%p149) target = $region32
        $region31: #{tpu_custom_call.1} parent=27 // pred_region
          %152 = dma.done [#allocation4], 32
        $region32: #{tpu_custom_call.1} parent=27 // pred_fallthru
          _
        %153 = sfence
        %p154 = scmp.lt.s32.totalorder %s21, 1
        %s155 = scalar_select %p154, %s21, 1
        %p156 = scmp.lt.s32.totalorder %s22, 1
        %s157 = scalar_select %p156, %s22, 1
        %s158 = smul.addr %s155, 2
        %s159 = sadd.s32 %s157, %s158
        %s160 = smul.addr %s159, 4
        %s161 = scalar_lea.vmem %s0, %s160
        %p162 = pneg %p52
        %p163 = pneg %p49
        %p164 = pneg %p73
        %p165 = pneg %p70
        %p166 = pneg %p101
        %p167 = pneg %p98
        %s168 = sand.u32 %s88, 1
        %s169 = scalar_lea.sflag [#allocation3], %s168
        %s170 = sand.u32 %s88, 1
        %s171 = smul.addr %s170, 32
        %s172 = scalar_lea.vmem [#allocation5], %s171
        %p173 = scmp.lt.s32.totalorder %s21, 1
        %s174 = scalar_select %p173, %s21, 1
        %p175 = scmp.lt.s32.totalorder %s22, 1
        %s176 = scalar_select %p175, %s22, 1
        %s177 = smul.addr %s174, 2
        %s178 = sadd.s32 %s176, %s177
        %s179 = smul.addr %s178, 4
        %s180 = scalar_lea.vmem %s0, %s179
        %v182 = vld [vmem:[%s180] sm:$0x1]
        %v183 = vld [vmem:[%s180 + $0x1] sm:$0x1]
        %v184 = vld [vmem:[%s180 + $0x2] sm:$0x1]
        %s185 = smul.u32 %s22, 128
        %s186 = sld [smem:[#allocation2 + %s185]]
        %s187 = sadd.s32 %s185, 1
        %s188 = sld [smem:[#allocation2 + %s187]]
        %s189 = sadd.s32 %s185, 2
        %s190 = sld [smem:[#allocation2 + %s189]]
        %v191 = vstv %s186
        %v192 = vrcp.pop %v191
        %s193 = vtos %v192
        %v194 = vstv %s188
        %v195 = vrcp.pop %v194
        %s196 = vtos %v195
        %v197 = vstv %s190
        %v198 = vrcp.pop %v197
        %s199 = vtos %v198
        %s200 = smul.f32 %s186, 0.5
        %v201 = vstv %s200
        %v202 = vsub.f32 %v182, %v201
        %v203 = vstv %s193
        %v204 = vmul.f32 %v202, %v203
        %v205 = vround.ne.pseudo %v204
        %v206 = vsub.f32 %v205, -8.0
        %s207 = smul.f32 %s188, 0.5
        %v208 = vstv %s207
        %v209 = vsub.f32 %v183, %v208
        %v210 = vstv %s196
        %v211 = vmul.f32 %v209, %v210
        %v212 = vround.ne.pseudo %v211
        %v213 = vsub.f32 %v212, -8.0
        %s214 = smul.f32 %s190, 0.5
        %v215 = vstv %s214
        %v216 = vsub.f32 %v184, %v215
        %v217 = vstv %s199
        %v218 = vmul.f32 %v216, %v217
        %v219 = vround.ne.pseudo %v218
        %v220 = vsub.f32 %v219, -8.0
        %vm221 = vcmp.ge.f32.partialorder %v206, 0.0
        %vm222 = vcmp.lt.f32.partialorder %v206, 16.0
        %vm223 = vmand %vm221, %vm222
        %vm224 = vcmp.ge.f32.partialorder %v213, 0.0
        %vm225 = vmand %vm223, %vm224
        %vm226 = vcmp.lt.f32.partialorder %v213, 16.0
        %vm227 = vmand %vm225, %vm226
        %vm228 = vcmp.ge.f32.partialorder %v220, 0.0
        %vm229 = vmand %vm227, %vm228
        %vm230 = vcmp.lt.f32.partialorder %v220, 16.0
        %vm231 = vmand %vm229, %vm230
        %v232 = vmax.f32 %v206, 0.0
        %v233 = vmin.f32 %v232, 15.0
        %v234 = vcvt.f32.s32.to.zero.pseudo %v233
        %v235 = vmax.f32 %v213, 0.0
        %v236 = vmin.f32 %v235, 15.0
        %v237 = vcvt.f32.s32.to.zero.pseudo %v236
        %v238 = vmax.f32 %v220, 0.0
        %v239 = vmin.f32 %v238, 15.0
        %v240 = vcvt.f32.s32.to.zero.pseudo %v239
        %v241 = vmul.u32 %v237, 16
        %v242 = vadd.s32 %v241, %v240
        %v243 = vlaneseq
        %v244 = vshrl.u32 %v243, 7
        %v245 = vadd.s32 %v244, 8
        %v246 = vadd.s32 %v244, 16
        %v247 = vadd.s32 %v244, 24
        %v248 = vadd.s32 %v244, 32
        %v249 = vadd.s32 %v244, 40
        %v250 = vadd.s32 %v244, 48
        %v251 = vadd.s32 %v244, 56
        %v252 = vadd.s32 %v244, 64
        %v253 = vadd.s32 %v244, 72
        %v254 = vadd.s32 %v244, 80
        %v255 = vadd.s32 %v244, 88
        %v256 = vadd.s32 %v244, 96
        %v257 = vadd.s32 %v244, 104
        %v258 = vadd.s32 %v244, 112
        %v259 = vadd.s32 %v244, 120
        %v260 = vadd.s32 %v244, 128
        %v261 = vadd.s32 %v244, 136
        %v262 = vadd.s32 %v244, 144
        %v263 = vadd.s32 %v244, 152
        %v264 = vadd.s32 %v244, 160
        %v265 = vadd.s32 %v244, 168
        %v266 = vadd.s32 %v244, 176
        %v267 = vadd.s32 %v244, 184
        %v268 = vadd.s32 %v244, 192
        %v269 = vadd.s32 %v244, 200
        %v270 = vadd.s32 %v244, 208
        %v271 = vadd.s32 %v244, 216
        %v272 = vadd.s32 %v244, 224
        %v273 = vadd.s32 %v244, 232
        %v274 = vadd.s32 %v244, 240
        %v275 = vadd.s32 %v244, 248
        %v276 = vlaneseq
        %v277 = vshrl.u32 %v276, 7
        %v278 = vsub.s32 0, %v277
        %v279 = vrot.slane %v234, %v278
        %vm280 = vcmp.eq.s32.totalorder %v244, %v279
        %vm281 = vcmp.eq.s32.totalorder %v245, %v279
        %v282 = vsel %vm231, 1, 0
        %v283 = vlaneseq
        %v284 = vshrl.u32 %v283, 7
        %v285 = vsub.s32 0, %v284
        %v286 = vrot.slane %v282, %v285
        %vm287 = vcmp.eq.s32.totalorder %v286, 1
        %vm288 = vmand %vm280, %vm287
        %vm289 = vmand %vm281, %vm287
        %v290 = vsel %vm288, 1, 0
        %v291 = vsel %vm289, 1, 0
        %v292 = vcvt.s32.f32 %v290
        %v293 = vcvt.s32.f32 %v291
        %v294 = vpack.c.bf16 %v293, %v292
        %v295 = vlaneseq
        %v296 = vshrl.u32 %v295, 7
        %v297 = vsub.s32 0, %v296
        %v298 = vrot.slane %v242, %v297
        %vm299 = vcmp.eq.s32.totalorder %v244, %v298
        %vm300 = vcmp.eq.s32.totalorder %v245, %v298
        %vm301 = vcmp.eq.s32.totalorder %v246, %v298
        %vm302 = vcmp.eq.s32.totalorder %v247, %v298
        %vm303 = vcmp.eq.s32.totalorder %v248, %v298
        %vm304 = vcmp.eq.s32.totalorder %v249, %v298
        %vm305 = vcmp.eq.s32.totalorder %v250, %v298
        %vm306 = vcmp.eq.s32.totalorder %v251, %v298
        %vm307 = vcmp.eq.s32.totalorder %v252, %v298
        %vm308 = vcmp.eq.s32.totalorder %v253, %v298
        %vm309 = vcmp.eq.s32.totalorder %v254, %v298
        %vm310 = vcmp.eq.s32.totalorder %v255, %v298
        %vm311 = vcmp.eq.s32.totalorder %v256, %v298
        %vm312 = vcmp.eq.s32.totalorder %v257, %v298
        %vm313 = vcmp.eq.s32.totalorder %v258, %v298
        %vm314 = vcmp.eq.s32.totalorder %v259, %v298
        %vm315 = vcmp.eq.s32.totalorder %v260, %v298
        %vm316 = vcmp.eq.s32.totalorder %v261, %v298
        %vm317 = vcmp.eq.s32.totalorder %v262, %v298
        %vm318 = vcmp.eq.s32.totalorder %v263, %v298
        %vm319 = vcmp.eq.s32.totalorder %v264, %v298
        %vm320 = vcmp.eq.s32.totalorder %v265, %v298
        %vm321 = vcmp.eq.s32.totalorder %v266, %v298
        %vm322 = vcmp.eq.s32.totalorder %v267, %v298
        %vm323 = vcmp.eq.s32.totalorder %v268, %v298
        %vm324 = vcmp.eq.s32.totalorder %v269, %v298
        %vm325 = vcmp.eq.s32.totalorder %v270, %v298
        %vm326 = vcmp.eq.s32.totalorder %v271, %v298
        %vm327 = vcmp.eq.s32.totalorder %v272, %v298
        %vm328 = vcmp.eq.s32.totalorder %v273, %v298
        %vm329 = vcmp.eq.s32.totalorder %v274, %v298
        %vm330 = vcmp.eq.s32.totalorder %v275, %v298
        %v331 = vsel %vm299, 1, 0
        %v332 = vsel %vm300, 1, 0
        %v333 = vsel %vm301, 1, 0
        %v334 = vsel %vm302, 1, 0
        %v335 = vsel %vm303, 1, 0
        %v336 = vsel %vm304, 1, 0
        %v337 = vsel %vm305, 1, 0
        %v338 = vsel %vm306, 1, 0
        %v339 = vsel %vm307, 1, 0
        %v340 = vsel %vm308, 1, 0
        %v341 = vsel %vm309, 1, 0
        %v342 = vsel %vm310, 1, 0
        %v343 = vsel %vm311, 1, 0
        %v344 = vsel %vm312, 1, 0
        %v345 = vsel %vm313, 1, 0
        %v346 = vsel %vm314, 1, 0
        %v347 = vsel %vm315, 1, 0
        %v348 = vsel %vm316, 1, 0
        %v349 = vsel %vm317, 1, 0
        %v350 = vsel %vm318, 1, 0
        %v351 = vsel %vm319, 1, 0
        %v352 = vsel %vm320, 1, 0
        %v353 = vsel %vm321, 1, 0
        %v354 = vsel %vm322, 1, 0
        %v355 = vsel %vm323, 1, 0
        %v356 = vsel %vm324, 1, 0
        %v357 = vsel %vm325, 1, 0
        %v358 = vsel %vm326, 1, 0
        %v359 = vsel %vm327, 1, 0
        %v360 = vsel %vm328, 1, 0
        %v361 = vsel %vm329, 1, 0
        %v362 = vsel %vm330, 1, 0
        %v363 = vcvt.s32.f32 %v331
        %v364 = vcvt.s32.f32 %v332
        %v365 = vcvt.s32.f32 %v333
        %v366 = vcvt.s32.f32 %v334
        %v367 = vcvt.s32.f32 %v335
        %v368 = vcvt.s32.f32 %v336
        %v369 = vcvt.s32.f32 %v337
        %v370 = vcvt.s32.f32 %v338
        %v371 = vcvt.s32.f32 %v339
        %v372 = vcvt.s32.f32 %v340
        %v373 = vcvt.s32.f32 %v341
        %v374 = vcvt.s32.f32 %v342
        %v375 = vcvt.s32.f32 %v343
        %v376 = vcvt.s32.f32 %v344
        %v377 = vcvt.s32.f32 %v345
        %v378 = vcvt.s32.f32 %v346
        %v379 = vcvt.s32.f32 %v347
        %v380 = vcvt.s32.f32 %v348
        %v381 = vcvt.s32.f32 %v349
        %v382 = vcvt.s32.f32 %v350
        %v383 = vcvt.s32.f32 %v351
        %v384 = vcvt.s32.f32 %v352
        %v385 = vcvt.s32.f32 %v353
        %v386 = vcvt.s32.f32 %v354
        %v387 = vcvt.s32.f32 %v355
        %v388 = vcvt.s32.f32 %v356
        %v389 = vcvt.s32.f32 %v357
        %v390 = vcvt.s32.f32 %v358
        %v391 = vcvt.s32.f32 %v359
        %v392 = vcvt.s32.f32 %v360
        %v393 = vcvt.s32.f32 %v361
        %v394 = vcvt.s32.f32 %v362
        %v395 = vpack.c.bf16 %v364, %v363
        %v396 = vpack.c.bf16 %v366, %v365
        %v397 = vpack.c.bf16 %v368, %v367
        %v398 = vpack.c.bf16 %v370, %v369
        %v399 = vpack.c.bf16 %v372, %v371
        %v400 = vpack.c.bf16 %v374, %v373
        %v401 = vpack.c.bf16 %v376, %v375
        %v402 = vpack.c.bf16 %v378, %v377
        %v403 = vpack.c.bf16 %v380, %v379
        %v404 = vpack.c.bf16 %v382, %v381
        %v405 = vpack.c.bf16 %v384, %v383
        %v406 = vpack.c.bf16 %v386, %v385
        %v407 = vpack.c.bf16 %v388, %v387
        %v408 = vpack.c.bf16 %v390, %v389
        %v409 = vpack.c.bf16 %v392, %v391
        %v410 = vpack.c.bf16 %v394, %v393
        %411 = vmatprep.subr.bf16.mxu0 0
        %412 = vmatpush1.bf16.xpose.msra.mxu0 %v395
        %413 = vmatprep.subr.bf16.mxu0 0
        %414 = vmatpush1.bf16.xpose.msra.mxu0 %v396
        %415 = vmatprep.subr.bf16.mxu0 0
        %416 = vmatpush1.bf16.xpose.msra.mxu0 %v397
        %417 = vmatprep.subr.bf16.mxu0 0
        %418 = vmatpush1.bf16.xpose.msra.mxu0 %v398
        %419 = vmatprep.subr.bf16.mxu0 0
        %420 = vmatpush1.bf16.xpose.msra.mxu0 %v399
        %421 = vmatprep.subr.bf16.mxu0 0
        %422 = vmatpush1.bf16.xpose.msra.mxu0 %v400
        %423 = vmatprep.subr.bf16.mxu0 0
        %424 = vmatpush1.bf16.xpose.msra.mxu0 %v401
        %425 = vmatprep.subr.bf16.mxu0 0
        %426 = vmatpush1.bf16.xpose.msra.mxu0 %v402
        %427 = vmatprep.subr.bf16.mxu0 0
        %428 = vmatpush1.bf16.xpose.msra.mxu0 %v403
        %429 = vmatprep.subr.bf16.mxu0 0
        %430 = vmatpush1.bf16.xpose.msra.mxu0 %v404
        %431 = vmatprep.subr.bf16.mxu0 0
        %432 = vmatpush1.bf16.xpose.msra.mxu0 %v405
        %433 = vmatprep.subr.bf16.mxu0 0
        %434 = vmatpush1.bf16.xpose.msra.mxu0 %v406
        %435 = vmatprep.subr.bf16.mxu0 0
        %436 = vmatpush1.bf16.xpose.msra.mxu0 %v407
        %437 = vmatprep.subr.bf16.mxu0 0
        %438 = vmatpush1.bf16.xpose.msra.mxu0 %v408
        %439 = vmatprep.subr.bf16.mxu0 0
        %440 = vmatpush1.bf16.xpose.msra.mxu0 %v409
        %441 = vmatprep.subr.bf16.mxu0 0
        %442 = vmatpush1.bf16.xpose.msra.mxu0 %v410
        %443 = vmatprep.mubr.bf16.mxu0 0
        %444 = vmatmul.mubr.bf16.gmra.mrb[0].mxu0 %v294
        %v445 = vpop.f32.mrb[0].mxu0
        %v446 = vadd.f32 0.0, %v445
        %v447 = vpop.f32.mrb[0].mxu0
        %v448 = vadd.f32 0.0, %v447
        %v449 = vpop.f32.mrb[0].mxu0
        %v450 = vadd.f32 0.0, %v449
        %v451 = vpop.f32.mrb[0].mxu0
        %v452 = vadd.f32 0.0, %v451
        %453 = vdwg.mxu0
        %vm454 = vcmp.gt.f32.partialorder %v446, 0.0
        %vm455 = vcmp.gt.f32.partialorder %v448, 0.0
        %vm456 = vcmp.gt.f32.partialorder %v450, 0.0
        %vm457 = vcmp.gt.f32.partialorder %v452, 0.0
        %v458 = vsel %vm454, 1, 0
        %v459 = vsel %vm455, 1, 0
        %v460 = vsel %vm456, 1, 0
        %v461 = vsel %vm457, 1, 0
        %v462 = vcvt.s32.f32 %v458
        %v463 = vcvt.s32.f32 %v459
        %v464 = vcvt.s32.f32 %v460
        %v465 = vcvt.s32.f32 %v461
        %466 = vst [vmem:[%s172] sm:$0xff] %v462
        %467 = vst [vmem:[%s172 + $0x8] sm:$0xff] %v463
        %468 = vst [vmem:[%s172 + $0x10] sm:$0xff] %v464
        %469 = vst [vmem:[%s172 + $0x18] sm:$0xff] %v465
        %s470 = sand.u32 %s88, 1
        %s471 = scalar_lea.sflag [#allocation3], %s470
        %s472 = sand.u32 %s88, 1
        %s473 = smul.addr %s472, 32
        %s474 = scalar_lea.vmem [#allocation5], %s473
        // Predicated region
        $region33: #{tpu_custom_call.1} parent=27 // pred_check
          %p475 = pneg %p98
        $region34: #{tpu_custom_call.1} parent=27 // pred_check_branch
          %477 = sbr.rel (%p475) target = $region36
        $region35: #{tpu_custom_call.1} parent=27 // pred_region
          %s479 = ssub.s32 512, 512
          %480 = vsyncadd %s471, %s479
          %s481 = smul.addr %s22, 4
          %s482 = smul.addr %s21, 8
          %s483 = sadd.s32 %s481, %s482
          %s484 = smul.addr %s483, 128
          %s485 = scalar_lea.hbm %s2, %s484
          %s486 = sshll.u32 %s474, 4
          %s487 = int_to_ptr.vmem [resolvable:$true] %s486
          %492 = dma.vmem_to_hbm [thread:$0]  %s487, 512, %s485, %s471, 256, 256, 16
        $region36: #{tpu_custom_call.1} parent=27 // pred_fallthru
          _
      $region28: #{tpu_custom_call.1} parent=5 // pred_fallthru
        _
      %p493 = scmp.le.s32.totalorder 2, %s12
      // Predicated region
      $region37: #{tpu_custom_call.1} parent=5 // pred_check
        %p494 = pneg %p493
      $region38: #{tpu_custom_call.1} parent=5 // pred_check_branch
        %496 = sbr.rel (%p494) target = $region40
      $region39: #{tpu_custom_call.1} parent=5 // pred_region
        %s497 = ssub.s32 %s12, 2
        // Predicated region
        $region41: #{tpu_custom_call.1} parent=39 // pred_check
          %p498 = pneg %p104
        $region42: #{tpu_custom_call.1} parent=39 // pred_check_branch
          %500 = sbr.rel (%p498) target = $region44
        $region43: #{tpu_custom_call.1} parent=39 // pred_region
          %s501 = sand.u32 %s89, 1
          %s502 = scalar_lea.sflag [#allocation3], %s501
          %s503 = sand.u32 %s89, 1
          %s504 = smul.addr %s503, 32
          %s505 = scalar_lea.vmem [#allocation5], %s504
          %506 = dma.done %s502, 512
        $region44: #{tpu_custom_call.1} parent=39 // pred_fallthru
          _
      $region40: #{tpu_custom_call.1} parent=5 // pred_fallthru
        _
    $region6: #{tpu_custom_call.1} parent=1 // loop_footer
      %s16 = sadd.s32 1, %s12
    $region7: #{tpu_custom_call.1} parent=1 // loop_footer_branch
      %11 = sbr.rel target = $region3
    $region8: #{tpu_custom_call.1} parent=1 // loop_exit
      _
    %507 = vsyncpa [#allocation3], 1
    %s508 = scalar_lea.sflag [#allocation3], 1
    %509 = vsyncpa %s508, 1
    %510 = vsyncpa [#allocation4], 1
    %s511 = scalar_lea.sflag [#allocation4], 1
    %512 = vsyncpa %s511, 1

</llo_original>
